<compile_context>
chip_gen: v6e
topology: v6e:2x2x1
jax: 0.10.0
libtpu: 0.0.40
codegen_flags: <defaults>
</compile_context>

<pallas_src>
import functools

import jax
import jax.numpy as jnp
from jax import lax
from jax.experimental import pallas as pl
from jax.experimental.pallas import tpu as pltpu


_SMALL_BLOCK_BYTES = 1 << 20


# --------------------------------------------------------------------------
# Generation-aware VMEM budgets.
# --------------------------------------------------------------------------
def _vmem_capacity_bytes():
    try:
        info = pltpu.get_tpu_info()
        cap = int(getattr(info, "vmem_capacity_bytes", 0) or 0)
        if cap > 0:
            return cap
    except Exception:
        pass
    return 64 * 1024 * 1024          # conservative default (v7x per-core VMEM)


def _vmem_ceiling():
    cap = _vmem_capacity_bytes()
    # v7x (64 MiB)  -> 56 MiB usable;  v5e/v6e (128 MiB) -> 120 MiB usable.
    return int(min(max(cap - (8 << 20), 32 << 20), 120 << 20))


def _vmem_limit(needed, ceiling):
    return int(min(max(int(needed * 1.25) + (2 << 20), 16 << 20), ceiling))


def _fallback_tile_bytes(ceiling):
    # ~8 MiB tiles on v7x, ~16 MiB on v5e/v6e: large enough that the ~0.35 us
    # per-grid-step overhead is a small fraction of the tile's DMA time.
    return int(max(2 << 20, min(16 << 20, (ceiling - (8 << 20)) // 6)))


# --------------------------------------------------------------------------
# Layout helpers.
# --------------------------------------------------------------------------
def _row_align(itemsize):
    # Sublane granularity for clean row slices (8 f32 rows, 16 bf16, 32 int8).
    return max(8, 32 // max(1, int(itemsize)))


def _pick_fold(C, HW):
    """Fold factor k so (C, HW) -> (C*k, HW//k) keeps the lane axis a 128 multiple."""
    cands = [k for k in range(1, min(HW, 4096) + 1)
             if HW % k == 0 and (HW // k) % 128 == 0]
    if not cands:
        return 1                       # handled via lane padding in the wrapper
    mult8 = [k for k in cands if (C * k) % 8 == 0]
    if mult8:
        return min(mult8)
    ge8 = [k for k in cands if C * k >= 8]
    if ge8:
        return min(ge8)
    return max(cands)


def _pick_row_tile(R, L, itemsize, budget_bytes):
    """Largest divisor of R (aligned multiple, or R itself) whose tile fits the budget."""
    align = _row_align(itemsize)
    cands = [d for d in range(1, R + 1) if R % d == 0 and (d % align == 0 or d == R)]
    fitting = [d for d in cands if d * L * itemsize <= budget_bytes]
    if fitting:
        return max(fitting)
    return min(cands)


# --------------------------------------------------------------------------
# Path 1: "small" -- several whole samples per grid step.
# --------------------------------------------------------------------------
def _small_kernel(x_ref, scale_ref, offset_ref, o_ref, *, n, vl):
    # x_ref/o_ref: (Bt, R, L) -- Bt whole samples; scale/offset: (R, 1).
    x = x_ref[...].astype(jnp.float32)
    if vl < x.shape[-1]:
        mask = lax.broadcasted_iota(jnp.int32, x.shape, 2) < vl
        xs = jnp.where(mask, x, 0.0)
    else:
        mask = None
        xs = x
    s = jnp.sum(jnp.sum(xs, axis=2, keepdims=True), axis=1, keepdims=True)
    mean = s * (1.0 / n)                                       # (Bt, 1, 1)
    d = x - mean
    if mask is not None:
        d = jnp.where(mask, d, 0.0)
    m2 = jnp.sum(jnp.sum(d * d, axis=2, keepdims=True), axis=1, keepdims=True)
    inv_std = lax.rsqrt(m2 * (1.0 / (n - 1.0)))                # unbiased, no eps
    a = scale_ref[...].astype(jnp.float32)[None, :, :] * inv_std     # (Bt, R, 1)
    b = offset_ref[...].astype(jnp.float32)[None, :, :] - mean * a
    o_ref[...] = (x * a + b).astype(o_ref.dtype)


def _small_path(x_view, scale_r, offset_r, n, vl, ceiling):
    B, R, L = x_view.shape
    blk = R * L * x_view.dtype.itemsize
    # Batch enough samples per grid step for ~1-2 MiB blocks.
    target = max(blk, min(2 << 20, ceiling // 16))
    bt = 1
    for d in range(1, B + 1):
        if B % d == 0 and d * blk <= target:
            bt = d
    needed = 4 * bt * blk + 3 * bt * R * L * 4 + (1 << 20)
    kern = functools.partial(_small_kernel, n=float(n), vl=vl)
    return pl.pallas_call(
        kern,
        out_shape=jax.ShapeDtypeStruct((B, R, L), x_view.dtype),
        grid_spec=pltpu.PrefetchScalarGridSpec(
            num_scalar_prefetch=0,
            grid=(B // bt,),
            in_specs=[
                pl.BlockSpec((bt, R, L), lambda i: (i, 0, 0)),
                pl.BlockSpec((R, 1), lambda i: (0, 0)),
                pl.BlockSpec((R, 1), lambda i: (0, 0)),
            ],
            out_specs=pl.BlockSpec((bt, R, L), lambda i: (i, 0, 0)),
        ),
        compiler_params=pltpu.CompilerParams(
            dimension_semantics=("parallel",),
            vmem_limit_bytes=_vmem_limit(needed, ceiling),
        ),
    )(x_view, scale_r, offset_r)


# --------------------------------------------------------------------------
# Path 2: "stream" -- 1 HBM read + 1 HBM write per sample, single-buffered
# sample-sized scratch, manual depth-2 DMA pipeline.
# --------------------------------------------------------------------------
def _stream_kernel(x_hbm, scale_ref, offset_ref, o_hbm,
                   xbuf, obuf, in_sem, out_sem, *, Rt, L, n, vl):
    b = pl.program_id(0)
    R = xbuf.shape[0]
    n_tiles = R // Rt
    nt = float(Rt) * float(vl)

    def in_copy(t, slot):
        return pltpu.make_async_copy(
            x_hbm.at[b, pl.ds(t * Rt, Rt), :],
            xbuf.at[pl.ds(t * Rt, Rt), :],
            in_sem.at[slot])

    def out_copy(t, slot):
        return pltpu.make_async_copy(
            obuf.at[slot],
            o_hbm.at[b, pl.ds(t * Rt, Rt), :],
            out_sem.at[slot])

    # ---- phase 1: stream the sample in; accumulate mean / M2 (Chan combine) ----
    in_copy(0, 0).start()
    if n_tiles > 1:
        in_copy(1, 1).start()

    def p1_body(t, carry):
        mean_acc, m2_acc = carry
        slot = t & 1
        in_copy(t, slot).wait()

        @pl.when(t + 2 < n_tiles)
        def _():
            in_copy(t + 2, slot).start()     # keep two inbound DMAs in flight

        row0 = pl.multiple_of(t * Rt, Rt)
        xt = xbuf[pl.ds(row0, Rt), :].astype(jnp.float32)
        if vl < L:
            mask = lax.broadcasted_iota(jnp.int32, (Rt, L), 1) < vl
            xs = jnp.where(mask, xt, 0.0)
        else:
            mask = None
            xs = xt
        tmean = jnp.sum(xs) * (1.0 / nt)
        d = xt - tmean
        if mask is not None:
            d = jnp.where(mask, d, 0.0)
        tm2 = jnp.sum(d * d)

        # Numerically stable parallel-Welford / Chan combine across tiles.
        n_prev = t.astype(jnp.float32) * nt
        n_new = n_prev + nt
        delta = tmean - mean_acc
        mean_new = mean_acc + delta * (nt / n_new)
        m2_new = m2_acc + tm2 + (delta * delta) * (n_prev * nt / n_new)
        return mean_new, m2_new

    mean, m2 = lax.fori_loop(
        0, n_tiles, p1_body,
        (jnp.zeros((), jnp.float32), jnp.zeros((), jnp.float32)))

    inv_std = lax.rsqrt(m2 * (1.0 / (n - 1.0)))    # unbiased (N-1), no eps (torch)

    # ---- phase 2: y = x*a + b tile by tile; stream the output out ----
    def p2_body(t, carry):
        slot = t & 1

        @pl.when(t >= 2)
        def _():
            out_copy(t - 2, slot).wait()           # outbound slot free before reuse

        row0 = pl.multiple_of(t * Rt, Rt)
        xt = xbuf[pl.ds(row0, Rt), :].astype(jnp.float32)
        a_t = scale_ref[pl.ds(row0, Rt), :].astype(jnp.float32) * inv_std
        b_t = offset_ref[pl.ds(row0, Rt), :].astype(jnp.float32) - mean * a_t
        obuf[slot] = (xt * a_t + b_t).astype(obuf.dtype)
        out_copy(t, slot).start()
        return carry

    lax.fori_loop(0, n_tiles, p2_body, 0)

    for tt in range(max(0, n_tiles - 2), n_tiles):  # static epilogue waits
        out_copy(tt, tt & 1).wait()


def _stream_path(x_view, scale_r, offset_r, n, vl, ceiling, row_tile=None):
    B, R, L = x_view.shape
    itemsize = x_view.dtype.itemsize
    blk = R * L * itemsize
    if row_tile is None:
        avail = max(ceiling - blk - (2 << 20), 1 << 19)
        row_tile = _pick_row_tile(R, L, itemsize, min(4 << 20, avail // 2))
    Rt = int(row_tile)
    align = _row_align(itemsize)
    assert R % Rt == 0 and (Rt % align == 0 or Rt == R)
    n_tiles = R // Rt
    n_oslots = 1 if n_tiles == 1 else 2
    tile_b = Rt * L * itemsize
    needed = blk + n_oslots * tile_b + 4 * R * 4 + (2 << 20)
    if needed > ceiling:                    # degenerate tiling; fall back safely
        return _tiled_path(x_view, scale_r, offset_r, n, vl, ceiling)

    kern = functools.partial(_stream_kernel, Rt=Rt, L=L, n=float(n), vl=vl)
    return pl.pallas_call(
        kern,
        out_shape=jax.ShapeDtypeStruct((B, R, L), x_view.dtype),
        grid_spec=pltpu.PrefetchScalarGridSpec(
            num_scalar_prefetch=0,
            grid=(B,),
            in_specs=[
                pl.BlockSpec(memory_space=pl.ANY),            # x stays in HBM
                pl.BlockSpec((R, 1), lambda bi: (0, 0)),      # per-row scale
                pl.BlockSpec((R, 1), lambda bi: (0, 0)),      # per-row offset
            ],
            out_specs=pl.BlockSpec(memory_space=pl.ANY),      # written via manual DMA
            scratch_shapes=[
                pltpu.VMEM((R, L), x_view.dtype),             # resident sample (1x)
                pltpu.VMEM((n_oslots, Rt, L), x_view.dtype),  # outbound tiles
                pltpu.SemaphoreType.DMA((2,)),                # inbound sems
                pltpu.SemaphoreType.DMA((2,)),                # outbound sems
            ],
        ),
        compiler_params=pltpu.CompilerParams(
            dimension_semantics=("parallel",),
            vmem_limit_bytes=_vmem_limit(needed, ceiling),
        ),
    )(x_view, scale_r, offset_r)


# --------------------------------------------------------------------------
# Path 3: "tiled" -- two passes over x for samples that do not fit in VMEM.
# --------------------------------------------------------------------------
def _tile_stats_kernel(x_ref, tmean_ref, tm2_ref, *, nt, vl):
    # x_ref: (Rt, L); outputs: per-tile mean and centered M2, splat to (8,128).
    x = x_ref[...].astype(jnp.float32)
    L = x.shape[-1]
    if vl < L:
        mask = lax.broadcasted_iota(jnp.int32, x.shape, 1) < vl
        xs = jnp.where(mask, x, 0.0)
    else:
        mask = None
        xs = x
    tmean = jnp.sum(xs) * (1.0 / nt)
    d = x - tmean
    if mask is not None:
        d = jnp.where(mask, d, 0.0)
    tm2 = jnp.sum(d * d)
    tmean_ref[...] = jnp.zeros_like(tmean_ref) + tmean
    tm2_ref[...] = jnp.zeros_like(tm2_ref) + tm2


def _apply_kernel(x_ref, a_ref, b_ref, o_ref):
    x = x_ref[...].astype(jnp.float32)
    o_ref[...] = (x * a_ref[...] + b_ref[...]).astype(o_ref.dtype)


def _tiled_path(x_view, scale_r, offset_r, n, vl, ceiling, row_tile=None):
    B, R, L = x_view.shape
    itemsize = x_view.dtype.itemsize
    if row_tile is None:
        row_tile = _pick_row_tile(R, L, itemsize, _fallback_tile_bytes(ceiling))
    Rt = int(row_tile)
    align = _row_align(itemsize)
    assert R % Rt == 0 and (Rt % align == 0 or Rt == R)
    n_tiles = R // Rt
    tile_b = Rt * L * itemsize
    nt = Rt * vl

    x_spec = pl.BlockSpec((pl.Squeezed(), Rt, L), lambda bi, r: (bi, r, 0))
    stat_spec = pl.BlockSpec((pl.Squeezed(), pl.Squeezed(), 8, 128),
                             lambda bi, r: (bi, r, 0, 0))

    # Pass 1 (fully parallel -> uses both v7x TensorCores even at B == 1):
    # per-tile mean and centered M2; the stable grouped combine runs in JAX.
    needed1 = 2 * tile_b + 2 * Rt * L * 4 + (2 << 20)
    tmean, tm2 = pl.pallas_call(
        functools.partial(_tile_stats_kernel, nt=float(nt), vl=vl),
        out_shape=(jax.ShapeDtypeStruct((B, n_tiles, 8, 128), jnp.float32),
                   jax.ShapeDtypeStruct((B, n_tiles, 8, 128), jnp.float32)),
        grid_spec=pltpu.PrefetchScalarGridSpec(
            num_scalar_prefetch=0,
            grid=(B, n_tiles),
            in_specs=[x_spec],
            out_specs=(stat_spec, stat_spec),
        ),
        compiler_params=pltpu.CompilerParams(
            dimension_semantics=("parallel", "parallel"),
            vmem_limit_bytes=_vmem_limit(needed1, ceiling),
        ),
    )(x_view)

    tmean = tmean[:, :, 0, 0]                                        # (B, n_tiles)
    tm2 = tm2[:, :, 0, 0]
    mean = jnp.mean(tmean, axis=1)                                   # equal tile sizes
    m2 = jnp.sum(tm2, axis=1) + float(nt) * jnp.sum(
        (tmean - mean[:, None]) ** 2, axis=1)
    var = m2 / jnp.float32(n - 1)                                    # unbiased, no eps
    inv_std = lax.rsqrt(var)
    a = scale_r.astype(jnp.float32)[None] * inv_std[:, None, None]   # (B, R, 1)
    b = offset_r.astype(jnp.float32)[None] - mean[:, None, None] * a

    ab_spec = pl.BlockSpec((pl.Squeezed(), Rt, 1), lambda bi, r: (bi, r, 0))
    needed2 = 4 * tile_b + 2 * Rt * L * 4 + (2 << 20)
    return pl.pallas_call(
        _apply_kernel,
        out_shape=jax.ShapeDtypeStruct((B, R, L), x_view.dtype),
        grid_spec=pltpu.PrefetchScalarGridSpec(
            num_scalar_prefetch=0,
            grid=(B, n_tiles),
            in_specs=[x_spec, ab_spec, ab_spec],
            out_specs=x_spec,
        ),
        compiler_params=pltpu.CompilerParams(
            dimension_semantics=("parallel", "parallel"),
            vmem_limit_bytes=_vmem_limit(needed2, ceiling),
        ),
    )(x_view, a, b)


# --------------------------------------------------------------------------
# Public wrapper.
# --------------------------------------------------------------------------
def my_layer_norm_2d(x, scale, offset, *, force_path=None, row_tile=None):
    """x: (B, C, H, W); scale/offset: (1, C, 1, 1).  Returns (B, C, H, W)."""
    B, C, H, W = x.shape
    HW = H * W
    n = C * HW

    k = _pick_fold(C, HW)
    L0 = HW // k
    if L0 % 128 != 0:
        # Awkward spatial extent: keep channels on the sublane axis, pad the
        # lane axis to a 128 multiple (pads masked out of stats, cropped from
        # the output) so stores stay lane-dense (no vst.msk penalty).
        k, L0 = 1, HW
        L = ((HW + 127) // 128) * 128
        vl = HW
    else:
        L = L0
        vl = L0
    R = C * k

    x_view = x.reshape(B, R, L0)
    if L != L0:
        x_view = jnp.pad(x_view, ((0, 0), (0, 0), (0, L - L0)))
    scale_r = jnp.repeat(jnp.reshape(scale, (C, 1)), k, axis=0)       # (R, 1)
    offset_r = jnp.repeat(jnp.reshape(offset, (C, 1)), k, axis=0)     # (R, 1)

    ceiling = _vmem_ceiling()
    blk = R * L * x.dtype.itemsize
    if force_path is None:
        if blk <= _SMALL_BLOCK_BYTES:
            path = "small"
        elif blk + (6 << 20) <= ceiling:
            path = "stream"
        else:
            path = "tiled"
    else:
        path = force_path

    if path == "small":
        out = _small_path(x_view, scale_r, offset_r, n, vl, ceiling)
    elif path == "stream":
        out = _stream_path(x_view, scale_r, offset_r, n, vl, ceiling,
                           row_tile=row_tile)
    else:
        out = _tiled_path(x_view, scale_r, offset_r, n, vl, ceiling,
                          row_tile=row_tile)

    if L != L0:
        out = out[:, :, :L0]
    return out.reshape(B, C, H, W)


def _reference(x, scale, offset):
    n = x.shape[-3] * x.shape[-2] * x.shape[-1]
    mean = jnp.mean(x, axis=(-3, -2, -1), keepdims=True)
    var = jnp.sum((x - mean) ** 2, axis=(-3, -2, -1), keepdims=True) / (n - 1)
    return scale * ((x - mean) / jnp.sqrt(var)) + offset


if __name__ == "__main__":
    key = jax.random.PRNGKey(0)
    ks = jax.random.split(key, 12)

    def check(out, x, scale, offset, atol, rtol, name):
        ref = _reference(x.astype(jnp.float32), scale, offset)
        ok = jnp.allclose(out.astype(jnp.float32), ref, atol=atol, rtol=rtol)
        assert bool(ok), f"{name} path mismatch"

    # 1) small batched path (module-consistent shape; C=4 folds to (8, 128)).
    x = jax.random.normal(ks[0], (2, 4, 16, 16), jnp.float32)
    s = jax.random.normal(ks[1], (1, 4, 1, 1), jnp.float32)
    o = jax.random.normal(ks[2], (1, 4, 1, 1), jnp.float32)
    out = jax.block_until_ready(my_layer_norm_2d(x, s, o))
    check(out, x, s, o, 1e-5, 1e-5, "small")

    # 2) streaming 1-read/1-write path (forced; 4 row tiles exercise the
    #    depth-2 inbound pipeline, the outbound double buffer and the epilogue).
    x = jax.random.normal(ks[3], (2, 32, 32, 32), jnp.float32)
    s = jax.random.normal(ks[4], (1, 32, 1, 1), jnp.float32)
    o = jax.random.normal(ks[5], (1, 32, 1, 1), jnp.float32)
    out = jax.block_until_ready(
        my_layer_norm_2d(x, s, o, force_path="stream", row_tile=8))
    check(out, x, s, o, 1e-5, 1e-5, "stream")

    # 3) tiled two-pass fallback (forced; 2 row tiles per sample).
    x = jax.random.normal(ks[6], (2, 16, 16, 16), jnp.float32)
    s = jax.random.normal(ks[7], (1, 16, 1, 1), jnp.float32)
    o = jax.random.normal(ks[8], (1, 16, 1, 1), jnp.float32)
    out = jax.block_until_ready(
        my_layer_norm_2d(x, s, o, force_path="tiled", row_tile=8))
    check(out, x, s, o, 1e-5, 1e-5, "tiled")

    # 4) awkward spatial extent (H*W = 144, not a 128 multiple) -> lane padding
    #    plus masked statistics.
    x = jax.random.normal(ks[9], (2, 8, 12, 12), jnp.float32)
    s = jax.random.normal(ks[10], (1, 8, 1, 1), jnp.float32)
    o = jax.random.normal(ks[11], (1, 8, 1, 1), jnp.float32)
    out = jax.block_until_ready(my_layer_norm_2d(x, s, o))
    check(out, x, s, o, 1e-5, 1e-5, "padded")

    # 5) bf16 input (per-tile/block f32 math, bf16 stores).
    xb = jax.random.normal(ks[0], (2, 4, 16, 16), jnp.float32).astype(jnp.bfloat16)
    out = jax.block_until_ready(my_layer_norm_2d(xb, s[:, :4], o[:, :4]))
    check(out, xb, s[:, :4], o[:, :4], 1e-1, 5e-2, "bf16")

    print("KERNEL_OK")
</pallas_src>

<mosaic_0001>
module attributes {stable_mosaic.version = 11 : i64} {
  func.func @_small_kernel(%arg0: i32, %arg1: memref<2x8x128xf32, #tpu.memory_space<vmem>>, %arg2: memref<8x1xf32, #tpu.memory_space<vmem>>, %arg3: memref<8x1xf32, #tpu.memory_space<vmem>>, %arg4: memref<2x8x128xf32, #tpu.memory_space<vmem>>) attributes {dimension_semantics = [#tpu.dimension_semantics<parallel>], iteration_bounds = array<i64: 1>, scalar_prefetch = 0 : i64, scratch_operands = 0 : i64, tpu.core_type = #tpu.core_type<tc>, window_params = [{transform_indices = @transform_0, window_bounds = array<i64: 2, 8, 128>}, {pipeline_mode = #tpu.pipeline_mode<synchronous>, transform_indices = @transform_1, window_bounds = array<i64: 8, 1>}, {pipeline_mode = #tpu.pipeline_mode<synchronous>, transform_indices = @transform_2, window_bounds = array<i64: 8, 1>}, {transform_indices = @transform_3, window_bounds = array<i64: 2, 8, 128>}]} {
    %c0 = arith.constant 0 : index
    %c0_0 = arith.constant 0 : index
    %c0_1 = arith.constant 0 : index
    %0 = vector.load %arg1[%c0, %c0_0, %c0_1] : memref<2x8x128xf32, #tpu.memory_space<vmem>>, vector<2x8x128xf32>
    %cst = arith.constant dense<0.000000e+00> : vector<2x8xf32>
    %1 = vector.multi_reduction <add>, %0, %cst [2] : vector<2x8x128xf32> to vector<2x8xf32>
    %2 = vector.shape_cast %1 : vector<2x8xf32> to vector<2x8x1xf32>
    %cst_2 = arith.constant dense<0.000000e+00> : vector<2x1xf32>
    %3 = vector.multi_reduction <add>, %2, %cst_2 [1] : vector<2x8x1xf32> to vector<2x1xf32>
    %4 = vector.shape_cast %3 : vector<2x1xf32> to vector<2x1x1xf32>
    %cst_3 = arith.constant 9.765625E-4 : f32
    %5 = vector.broadcast %cst_3 : f32 to vector<2x1x1xf32>
    %6 = arith.mulf %4, %5 : vector<2x1x1xf32>
    %7 = vector.broadcast %6 : vector<2x1x1xf32> to vector<2x8x128xf32>
    %8 = arith.subf %0, %7 : vector<2x8x128xf32>
    %9 = arith.mulf %8, %8 : vector<2x8x128xf32>
    %cst_4 = arith.constant dense<0.000000e+00> : vector<2x8xf32>
    %10 = vector.multi_reduction <add>, %9, %cst_4 [2] : vector<2x8x128xf32> to vector<2x8xf32>
    %11 = vector.shape_cast %10 : vector<2x8xf32> to vector<2x8x1xf32>
    %cst_5 = arith.constant dense<0.000000e+00> : vector<2x1xf32>
    %12 = vector.multi_reduction <add>, %11, %cst_5 [1] : vector<2x8x1xf32> to vector<2x1xf32>
    %13 = vector.shape_cast %12 : vector<2x1xf32> to vector<2x1x1xf32>
    %cst_6 = arith.constant 9.77517105E-4 : f32
    %14 = vector.broadcast %cst_6 : f32 to vector<2x1x1xf32>
    %15 = arith.mulf %13, %14 : vector<2x1x1xf32>
    %16 = math.rsqrt %15 : vector<2x1x1xf32>
    %c0_7 = arith.constant 0 : index
    %c0_8 = arith.constant 0 : index
    %17 = vector.load %arg2[%c0_7, %c0_8] : memref<8x1xf32, #tpu.memory_space<vmem>>, vector<8x1xf32>
    %18 = vector.shape_cast %17 : vector<8x1xf32> to vector<1x8x1xf32>
    %19 = vector.broadcast %18 : vector<1x8x1xf32> to vector<2x8x1xf32>
    %20 = vector.broadcast %16 : vector<2x1x1xf32> to vector<2x8x1xf32>
    %21 = arith.mulf %19, %20 : vector<2x8x1xf32>
    %c0_9 = arith.constant 0 : index
    %c0_10 = arith.constant 0 : index
    %22 = vector.load %arg3[%c0_9, %c0_10] : memref<8x1xf32, #tpu.memory_space<vmem>>, vector<8x1xf32>
    %23 = vector.shape_cast %22 : vector<8x1xf32> to vector<1x8x1xf32>
    %24 = vector.broadcast %6 : vector<2x1x1xf32> to vector<2x8x1xf32>
    %25 = arith.mulf %24, %21 : vector<2x8x1xf32>
    %26 = vector.broadcast %23 : vector<1x8x1xf32> to vector<2x8x1xf32>
    %27 = arith.subf %26, %25 : vector<2x8x1xf32>
    %28 = vector.broadcast %21 : vector<2x8x1xf32> to vector<2x8x128xf32>
    %29 = arith.mulf %0, %28 : vector<2x8x128xf32>
    %30 = vector.broadcast %27 : vector<2x8x1xf32> to vector<2x8x128xf32>
    %31 = arith.addf %29, %30 : vector<2x8x128xf32>
    %c0_11 = arith.constant 0 : index
    %c0_12 = arith.constant 0 : index
    %c0_13 = arith.constant 0 : index
    %32 = vector.load %arg4[%c0_11, %c0_12, %c0_13] : memref<2x8x128xf32, #tpu.memory_space<vmem>>, vector<2x8x128xf32>
    tpu.vector_store %arg4[%c0_11, %c0_12, %c0_13], %31 {strides = array<i32>} : memref<2x8x128xf32, #tpu.memory_space<vmem>>, vector<2x8x128xf32>,
    return
  }
  func.func @transform_0(%arg0: i32) -> (i32, i32, i32) {
    %c0_i32 = arith.constant 0 : i32
    %c0_i32_0 = arith.constant 0 : i32
    %c0_i32_1 = arith.constant 0 : i32
    return %arg0, %c0_i32, %c0_i32_0 : i32, i32, i32
  }
  func.func @transform_1(%arg0: i32) -> (i32, i32) {
    %c0_i32 = arith.constant 0 : i32
    %c0_i32_0 = arith.constant 0 : i32
    %c0_i32_1 = arith.constant 0 : i32
    return %c0_i32, %c0_i32_0 : i32, i32
  }
  func.func @transform_2(%arg0: i32) -> (i32, i32) {
    %c0_i32 = arith.constant 0 : i32
    %c0_i32_0 = arith.constant 0 : i32
    %c0_i32_1 = arith.constant 0 : i32
    return %c0_i32, %c0_i32_0 : i32, i32
  }
  func.func @transform_3(%arg0: i32) -> (i32, i32, i32) {
    %c0_i32 = arith.constant 0 : i32
    %c0_i32_0 = arith.constant 0 : i32
    %c0_i32_1 = arith.constant 0 : i32
    return %arg0, %c0_i32, %c0_i32_0 : i32, i32, i32
  }
}

</mosaic_0001>

<llo_original>
// kernel: tpu_custom_call.1
$region0: #{tpu_custom_call.1}
  #allocation0 [shape = 'u32[]', space=smem, size = 0x4, offset = 0x4, fixed_abs, tag = 'smem constant byte address 0x4 - core index']
  #allocation1 [shape = 'u32[144,128]{1,0:T(1,128)}', space=vmem, size = 0x12000, scoped, tag = 'internal scratch']
  %s0 = inlined_call_operand.vmem [shape: f32[2,8,128], index: 0, kind: input, shape index: {}]
  %s1 = inlined_call_operand.vmem [shape: f32[8,1], index: 1, kind: input, shape index: {}]
  %s2 = inlined_call_operand.vmem [shape: f32[8,1], index: 2, kind: input, shape index: {}]
  %s3 = inlined_call_operand.hbm [shape: f32[2,8,128], index: 3, kind: output, shape index: {}]
  %s4 = sld [smem:[#allocation0]]
  $region22: #{tpu_custom_call.1} parent=0
    _
  %s6 = ssub.s32 1, %s4
  %s7 = scalar_select 0, %s6, %s4
  $region1: #{tpu_custom_call.1} parent=0
    #allocation2 [shape = 'u8[8192]{0}', space=vmem, size = 0x2000, scoped, tag = 'output window, operand 0, single buffered']
    #allocation3 [shape = 's32[1]{0}', space=sflag, size = 0x4, scoped, tag = 'scoped memory for tpu_custom_call.1']
    %8 = vsyncpa [#allocation3], 0
    // Predicated region
    $region2: #{tpu_custom_call.1} parent=1 // pred_check
      _
    $region3: #{tpu_custom_call.1} parent=1 // pred_check_branch
      %10 = sbr.rel (0) target = $region5
    $region4: #{tpu_custom_call.1} parent=1 // pred_region
      _
    $region5: #{tpu_custom_call.1} parent=1 // pred_fallthru
      _
    // Predicated region
    $region6: #{tpu_custom_call.1} parent=1 // pred_check
      _
    $region7: #{tpu_custom_call.1} parent=1 // pred_check_branch
      %12 = sbr.rel (0) target = $region9
    $region8: #{tpu_custom_call.1} parent=1 // pred_region
      _
    $region9: #{tpu_custom_call.1} parent=1 // pred_fallthru
      _
    // Predicated region
    $region10: #{tpu_custom_call.1} parent=1 // pred_check
      _
    $region11: #{tpu_custom_call.1} parent=1 // pred_check_branch
      %14 = sbr.rel (0) target = $region13
    $region12: #{tpu_custom_call.1} parent=1 // pred_region
      _
    $region13: #{tpu_custom_call.1} parent=1 // pred_fallthru
      _
    %v15 = vld [vmem:[%s0] sm:$0xff]
    %v16 = vld [vmem:[%s0 + $0x8] sm:$0xff]
    %17 = vadd.xlane.f32.xlu0 %v15
    %v18 = vpop.xlane.xlu0 %17
    %19 = vadd.xlane.f32.xlu0 %v16
    %v20 = vpop.xlane.xlu0 %19
    %v21 = vrot.slane %v18, 4
    %v22 = vadd.f32 %v18, %v21
    %v23 = vrot.slane %v22, 2
    %v24 = vadd.f32 %v22, %v23
    %v25 = vrot.slane %v24, 1
    %v26 = vadd.f32 %v24, %v25
    %v27 = vrot.slane %v20, 4
    %v28 = vadd.f32 %v20, %v27
    %v29 = vrot.slane %v28, 2
    %v30 = vadd.f32 %v28, %v29
    %v31 = vrot.slane %v30, 1
    %v32 = vadd.f32 %v30, %v31
    %v33 = vmul.f32 %v26, 0.0009765625
    %v34 = vmul.f32 %v32, 0.0009765625
    %v35 = vsub.f32 %v15, %v33
    %v36 = vsub.f32 %v16, %v34
    %v37 = vmul.f32 %v35, %v35
    %v38 = vmul.f32 %v36, %v36
    %39 = vadd.xlane.f32.xlu0 %v37
    %v40 = vpop.xlane.xlu0 %39
    %41 = vadd.xlane.f32.xlu0 %v38
    %v42 = vpop.xlane.xlu0 %41
    %v43 = vrot.slane %v40, 4
    %v44 = vadd.f32 %v40, %v43
    %v45 = vrot.slane %v44, 2
    %v46 = vadd.f32 %v44, %v45
    %v47 = vrot.slane %v46, 1
    %v48 = vadd.f32 %v46, %v47
    %v49 = vrot.slane %v42, 4
    %v50 = vadd.f32 %v42, %v49
    %v51 = vrot.slane %v50, 2
    %v52 = vadd.f32 %v50, %v51
    %v53 = vrot.slane %v52, 1
    %v54 = vadd.f32 %v52, %v53
    %v55 = vmul.f32 %v48, 0.0009775171
    %v56 = vmul.f32 %v54, 0.0009775171
    %v57 = vrsqrt.pop %v55
    %v58 = vrsqrt.pop %v56
    %v59 = vld [vmem:[%s1] sm:$0xff]
    %v60 = vmul.f32 %v59, %v57
    %v61 = vmul.f32 %v59, %v58
    %v62 = vld [vmem:[%s2] sm:$0xff]
    %v63 = vmul.f32 %v33, %v60
    %v64 = vmul.f32 %v34, %v61
    %v65 = vsub.f32 %v62, %v63
    %v66 = vsub.f32 %v62, %v64
    %68 = vset.pattern.permute.xlu0 0
    %69 = vperm.xlu0 %68, %v60
    %v70 = vpop.permute.xlu0 %69
    %73 = vset.pattern.permute.xlu0 0
    %74 = vperm.xlu0 %73, %v61
    %v75 = vpop.permute.xlu0 %74
    %v77 = vmul.f32 %v15, %v70
    %v78 = vmul.f32 %v16, %v75
    %80 = vset.pattern.permute.xlu0 0
    %81 = vperm.xlu0 %80, %v65
    %v82 = vpop.permute.xlu0 %81
    %85 = vset.pattern.permute.xlu0 0
    %86 = vperm.xlu0 %85, %v66
    %v87 = vpop.permute.xlu0 %86
    %v89 = vadd.f32 %v77, %v82
    %v90 = vadd.f32 %v78, %v87
    %91 = vst [vmem:[#allocation2] sm:$0xff] %v89
    %92 = vst [vmem:[#allocation2 + $0x8] sm:$0xff] %v90
    // Predicated region
    $region14: #{tpu_custom_call.1} parent=1 // pred_check
      _
    $region15: #{tpu_custom_call.1} parent=1 // pred_check_branch
      %94 = sbr.rel (0) target = $region17
    $region16: #{tpu_custom_call.1} parent=1 // pred_region
      %s96 = ssub.s32 256, 256
      %97 = vsyncadd [#allocation3], %s96
      %s98 = sshll.u32 [#allocation2], 4
      %s99 = int_to_ptr.vmem [resolvable:$true] %s98
      %104 = dma.vmem_to_hbm [thread:$0]  %s99, 256, %s3, [#allocation3], 128, 128, 8
    $region17: #{tpu_custom_call.1} parent=1 // pred_fallthru
      _
    // Predicated region
    $region18: #{tpu_custom_call.1} parent=1 // pred_check
      _
    $region19: #{tpu_custom_call.1} parent=1 // pred_check_branch
      %106 = sbr.rel (0) target = $region21
    $region20: #{tpu_custom_call.1} parent=1 // pred_region
      %107 = dma.done [#allocation3], 256
    $region21: #{tpu_custom_call.1} parent=1 // pred_fallthru
      _
    %108 = vsyncpa [#allocation3], 1

</llo_original>
